<compile_context>
chip_gen: v5e
topology: v5e:2x2
jax: 0.10.0
libtpu: 0.0.40
codegen_flags: <defaults>
</compile_context>

<pallas_src>
import functools

import jax
import jax.numpy as jnp
from jax.experimental import pallas as pl
from jax.experimental.pallas import tpu as pltpu

_LANES = 128          # lane width; every stream is reshaped to (rows, 128)
_SUBLANES = 8
_TEMP_TILES_F32 = 4   # rough count of compiler-materialized full-tile f32 temps


def _dtox_hybrid_loss_kernel(*refs, inv_weights):
    """refs = (y_ref, root_ref, aux_ref_0, ..., aux_ref_{L-1}, out_ref).

    Inputs are lane-dense (TM, 128) tiles.  The output block is
    (1, 2, 8, 128): sublane/lane partial sums for (root, weighted-aux); the
    reduction is finished in the wrapper, so the kernel needs no XLU
    cross-lane reduce and no broadcast, and all stores are unmasked vregs.
    """
    y_ref, root_ref, *aux_refs, out_ref = refs

    y = y_ref[...].astype(jnp.float32)       # upcast (bf16 inputs allowed)
    one_minus_y = 1.0 - y                    # hoisted, shared by all layers

    def bce_elem(p_ref):
        p = p_ref[...].astype(jnp.float32)
        # PyTorch nn.BCELoss clamps each log term at -100.
        log_p = jnp.maximum(jnp.log(p), -100.0)
        log_1mp = jnp.maximum(jnp.log(1.0 - p), -100.0)
        return -(y * log_p + one_minus_y * log_1mp)

    root_elem = bce_elem(root_ref)

    # Single weighted accumulator for all aux layers (1/layer_size baked in as
    # compile-time constants), so the epilogue cost is independent of L.
    aux_acc = jnp.zeros_like(y)
    for w, a_ref in zip(inv_weights, aux_refs):
        aux_acc = aux_acc + jnp.float32(w) * bce_elem(a_ref)

    tm = y.shape[0]
    # (TM,128) -> (TM/8, 8, 128) is tile-aligned (free); the axis-0 sum is
    # pure VPU vreg adds (no cross-lane / XLU work).
    root_part = jnp.sum(
        root_elem.reshape(tm // _SUBLANES, _SUBLANES, _LANES), axis=0)
    aux_part = jnp.sum(
        aux_acc.reshape(tm // _SUBLANES, _SUBLANES, _LANES), axis=0)
    out_ref[0, 0, :, :] = root_part
    out_ref[0, 1, :, :] = aux_part


def _tpu_vmem_capacity_bytes():
    try:
        info = pltpu.get_tpu_info()
    except Exception:
        return 64 << 20  # conservative (v7x-sized) default
    for attr in ("vmem_capacity_bytes", "vmem_size_bytes", "vmem_bytes"):
        v = getattr(info, attr, None)
        if isinstance(v, int) and v > 0:
            return v
    return 64 << 20


def _tpu_num_tensorcores():
    try:
        info = pltpu.get_tpu_info()
    except Exception:
        return 1
    for attr in ("num_cores", "core_count", "num_tensorcores",
                 "tensorcore_count"):
        v = getattr(info, attr, None)
        if isinstance(v, int) and v > 0:
            return v
    return 1


def _pick_block_rows(rows, bytes_per_row, budget_bytes, target_rows=4096):
    """Largest multiple-of-8 row tile that fits the double-buffered VMEM
    budget (inputs + in-kernel temps) and the target per-step size.  No
    divisibility requirement: the wrapper pads rows up to a multiple of the
    tile with loss-neutral elements."""
    max_rows = max(_SUBLANES, budget_bytes // max(bytes_per_row, 1))
    tm = int(min(target_rows, max_rows, max(rows, _SUBLANES)))
    return max(_SUBLANES, (tm // _SUBLANES) * _SUBLANES)


def _as_lane_dense(x, padded_rows, pad_value):
    """Flatten to 1-D, pad with loss-neutral values, reshape to (rows, 128)."""
    flat = jnp.ravel(x)
    pad = padded_rows * _LANES - flat.shape[0]
    if pad:
        flat = jnp.concatenate(
            [flat, jnp.full((pad,), pad_value, flat.dtype)])
    return flat.reshape(padded_rows, _LANES)


def dtox_hybrid_loss(y, root_pred_y, auxiliary_pred_y, *, alpha, layer_size,
                     block_rows=None, vmem_budget_bytes=None):
    """Pallas TPU implementation of DToxHybridLoss.forward.

    y / root_pred_y / each auxiliary_pred_y[l]: same-shape float32 or bfloat16
    arrays (targets in [0,1], predictions are probabilities).
    Returns (total_loss, root_loss, auxi_loss) as float32 scalars.
    """
    auxiliary_pred_y = list(auxiliary_pred_y)
    num_aux = len(auxiliary_pred_y)
    num_streams = 2 + num_aux

    assert root_pred_y.shape == y.shape
    for a in auxiliary_pred_y:
        assert a.shape == y.shape

    n_elems = int(y.size)
    rows = pl.cdiv(n_elems, _LANES)

    # Generation-aware VMEM budget (v7x: 64 MiB physical; v5e/v6e: 128 MiB).
    vmem_cap = _tpu_vmem_capacity_bytes()
    if vmem_budget_bytes is None:
        vmem_budget_bytes = min(vmem_cap // 2, 56 << 20)
    in_itemsize = sum(jnp.dtype(a.dtype).itemsize
                      for a in (y, root_pred_y, *auxiliary_pred_y))
    bytes_per_row = (2 * _LANES * in_itemsize          # double-buffered inputs
                     + _TEMP_TILES_F32 * _LANES * 4)   # in-kernel f32 temps

    tm = block_rows if block_rows is not None else _pick_block_rows(
        rows, bytes_per_row, vmem_budget_bytes)
    assert tm % _SUBLANES == 0, tm
    padded_rows = pl.cdiv(rows, tm) * tm
    num_blocks = padded_rows // tm

    # Lane-dense streams; padding uses y=1 / p=1, whose BCE contribution is 0.
    streams = [_as_lane_dense(y, padded_rows, 1.0),
               _as_lane_dense(root_pred_y, padded_rows, 1.0)]
    streams += [_as_lane_dense(a, padded_rows, 1.0) for a in auxiliary_pred_y]

    inv_weights = tuple(1.0 / float(layer_size[l]) for l in range(num_aux))
    kernel = functools.partial(_dtox_hybrid_loss_kernel,
                               inv_weights=inv_weights)

    in_block = pl.BlockSpec((tm, _LANES), lambda i: (i, 0))
    out_block = pl.BlockSpec((1, 2, _SUBLANES, _LANES), lambda i: (i, 0, 0, 0))

    # TODO(synk): if callers can supply logits instead of probabilities, a
    # fused BCE-with-logits form would cut EUP transcendentals ~4x; kept the
    # probability form to match nn.BCELoss semantics exactly.
    padded_total = padded_rows * _LANES
    cost = pl.CostEstimate(
        flops=9 * (1 + num_aux) * padded_total,
        transcendentals=2 * (1 + num_aux) * padded_total,
        bytes_accessed=padded_total * in_itemsize
                       + num_blocks * 2 * _SUBLANES * _LANES * 4,
    )
    vmem_limit = int(min(vmem_cap, vmem_budget_bytes + (16 << 20)))

    def build(dim_semantics):
        return pl.pallas_call(
            kernel,
            grid=(num_blocks,),
            out_shape=jax.ShapeDtypeStruct(
                (num_blocks, 2, _SUBLANES, _LANES), jnp.float32),
            in_specs=[in_block] * num_streams,
            out_specs=out_block,
            compiler_params=pltpu.CompilerParams(
                dimension_semantics=dim_semantics,
                vmem_limit_bytes=vmem_limit),
            cost_estimate=cost,
        )

    # On multi-TensorCore chips (v7x) shard the row grid across cores; use
    # plain PARALLEL elsewhere.  Fall back if CORE_PARALLEL is rejected.
    semantics = ((pltpu.CORE_PARALLEL,) if _tpu_num_tensorcores() > 1
                 else (pltpu.PARALLEL,))
    try:
        partials = build(semantics)(*streams)
    except Exception:
        if semantics == (pltpu.PARALLEL,):
            raise
        partials = build((pltpu.PARALLEL,))(*streams)

    # Tiny final reduction + normalization; mean uses the TRUE element count.
    sums = jnp.sum(partials, axis=(0, 2, 3))           # (2,)
    inv_n = 1.0 / jnp.float32(n_elems)
    root_loss = sums[0] * inv_n
    auxi_loss = sums[1] * inv_n
    total_loss = root_loss + jnp.float32(alpha) * auxi_loss
    return total_loss, root_loss, auxi_loss


def _reference(y, root_pred_y, auxiliary_pred_y, *, alpha, layer_size):
    y = y.astype(jnp.float32)

    def bce_mean(p):
        p = p.astype(jnp.float32)
        log_p = jnp.maximum(jnp.log(p), -100.0)
        log_1mp = jnp.maximum(jnp.log(1.0 - p), -100.0)
        return -jnp.mean(y * log_p + (1.0 - y) * log_1mp)

    root_loss = bce_mean(root_pred_y)
    auxi_loss = jnp.float32(0.0)
    for l, ap in enumerate(auxiliary_pred_y):
        auxi_loss = auxi_loss + (1.0 / float(layer_size[l])) * bce_mean(ap)
    total_loss = root_loss + alpha * auxi_loss
    return total_loss, root_loss, auxi_loss


def _make_inputs(key, m, n, num_aux, dtype):
    k_y, k_r, k_a = jax.random.split(key, 3)
    y = jax.random.bernoulli(k_y, p=0.5, shape=(m, n)).astype(dtype)
    root = jax.nn.sigmoid(
        jax.random.normal(k_r, (m, n), jnp.float32)).astype(dtype)
    aux_keys = jax.random.split(k_a, num_aux)
    aux = [jax.nn.sigmoid(
               jax.random.normal(aux_keys[l], (m, n), jnp.float32)).astype(dtype)
           for l in range(num_aux)]
    return y, root, aux


def _check(y, root, aux, *, alpha, layer_size, block_rows=None):
    got = dtox_hybrid_loss(y, root, aux, alpha=alpha, layer_size=layer_size,
                           block_rows=block_rows)
    got = jax.block_until_ready(got)
    want = _reference(y, root, aux, alpha=alpha, layer_size=layer_size)
    for g, w in zip(got, want):
        assert jnp.allclose(g, w, rtol=1e-5, atol=1e-5), (g, w)


if __name__ == "__main__":
    key = jax.random.PRNGKey(0)
    k1, k2, k3 = jax.random.split(key, 3)

    # Case 1: DTox-like shapes — per-sample scalar probabilities (N = 1);
    # exercises the lane-dense flatten + loss-neutral padding path.
    y1, r1, a1 = _make_inputs(k1, 16, 1, 3, jnp.float32)
    _check(y1, r1, a1, alpha=0.5, layer_size=[128.0, 64.0, 32.0])

    # Case 2: wider target, total elements not a multiple of 128*TM
    # (multi-block pipelined grid + padded last block).
    y2, r2, a2 = _make_inputs(k2, 64, 200, 2, jnp.float32)
    _check(y2, r2, a2, alpha=0.25, layer_size=[64.0, 16.0])

    # Case 3: bf16 inputs (halved HBM bytes), math upcast to f32 in-kernel.
    y3, r3, a3 = _make_inputs(k3, 32, 128, 2, jnp.bfloat16)
    _check(y3, r3, a3, alpha=0.1, layer_size=[32.0, 8.0])

    print("KERNEL_OK")
</pallas_src>

<mosaic_0001>
module attributes {stable_mosaic.version = 11 : i64} {
  func.func @_dtox_hybrid_loss_kernel(%arg0: i32, %arg1: memref<8x128xf32, #tpu.memory_space<vmem>>, %arg2: memref<8x128xf32, #tpu.memory_space<vmem>>, %arg3: memref<8x128xf32, #tpu.memory_space<vmem>>, %arg4: memref<8x128xf32, #tpu.memory_space<vmem>>, %arg5: memref<8x128xf32, #tpu.memory_space<vmem>>, %arg6: memref<1x2x8x128xf32, #tpu.memory_space<vmem>>) attributes {dimension_semantics = [#tpu.dimension_semantics<parallel>], iteration_bounds = array<i64: 1>, scalar_prefetch = 0 : i64, scratch_operands = 0 : i64, tpu.core_type = #tpu.core_type<tc>, window_params = [{transform_indices = @transform_0, window_bounds = array<i64: 8, 128>}, {transform_indices = @transform_1, window_bounds = array<i64: 8, 128>}, {transform_indices = @transform_2, window_bounds = array<i64: 8, 128>}, {transform_indices = @transform_3, window_bounds = array<i64: 8, 128>}, {transform_indices = @transform_4, window_bounds = array<i64: 8, 128>}, {transform_indices = @transform_5, window_bounds = array<i64: 1, 2, 8, 128>}]} {
    %c0 = arith.constant 0 : index
    %c0_0 = arith.constant 0 : index
    %0 = vector.load %arg1[%c0, %c0_0] : memref<8x128xf32, #tpu.memory_space<vmem>>, vector<8x128xf32>
    %cst = arith.constant 1.000000e+00 : f32
    %1 = vector.broadcast %cst : f32 to vector<8x128xf32>
    %2 = arith.subf %1, %0 : vector<8x128xf32>
    %c0_1 = arith.constant 0 : index
    %c0_2 = arith.constant 0 : index
    %3 = vector.load %arg2[%c0_1, %c0_2] : memref<8x128xf32, #tpu.memory_space<vmem>>, vector<8x128xf32>
    %4 = math.log %3 : vector<8x128xf32>
    %cst_3 = arith.constant -1.000000e+02 : f32
    %5 = vector.broadcast %cst_3 : f32 to vector<8x128xf32>
    %6 = arith.maximumf %4, %5 : vector<8x128xf32>
    %cst_4 = arith.constant 1.000000e+00 : f32
    %7 = vector.broadcast %cst_4 : f32 to vector<8x128xf32>
    %8 = arith.subf %7, %3 : vector<8x128xf32>
    %9 = math.log %8 : vector<8x128xf32>
    %cst_5 = arith.constant -1.000000e+02 : f32
    %10 = vector.broadcast %cst_5 : f32 to vector<8x128xf32>
    %11 = arith.maximumf %9, %10 : vector<8x128xf32>
    %12 = arith.mulf %0, %6 : vector<8x128xf32>
    %13 = arith.mulf %2, %11 : vector<8x128xf32>
    %14 = arith.addf %12, %13 : vector<8x128xf32>
    %cst_6 = arith.constant 0.000000e+00 : f32
    %15 = vector.broadcast %cst_6 : f32 to vector<8x128xf32>
    %16 = arith.subf %15, %14 : vector<8x128xf32>
    %cst_7 = arith.constant 0.000000e+00 : f32
    %17 = vector.broadcast %cst_7 : f32 to vector<8x128xf32>
    %c0_8 = arith.constant 0 : index
    %c0_9 = arith.constant 0 : index
    %18 = vector.load %arg3[%c0_8, %c0_9] : memref<8x128xf32, #tpu.memory_space<vmem>>, vector<8x128xf32>
    %19 = math.log %18 : vector<8x128xf32>
    %cst_10 = arith.constant -1.000000e+02 : f32
    %20 = vector.broadcast %cst_10 : f32 to vector<8x128xf32>
    %21 = arith.maximumf %19, %20 : vector<8x128xf32>
    %cst_11 = arith.constant 1.000000e+00 : f32
    %22 = vector.broadcast %cst_11 : f32 to vector<8x128xf32>
    %23 = arith.subf %22, %18 : vector<8x128xf32>
    %24 = math.log %23 : vector<8x128xf32>
    %cst_12 = arith.constant -1.000000e+02 : f32
    %25 = vector.broadcast %cst_12 : f32 to vector<8x128xf32>
    %26 = arith.maximumf %24, %25 : vector<8x128xf32>
    %27 = arith.mulf %0, %21 : vector<8x128xf32>
    %28 = arith.mulf %2, %26 : vector<8x128xf32>
    %29 = arith.addf %27, %28 : vector<8x128xf32>
    %cst_13 = arith.constant 0.000000e+00 : f32
    %30 = vector.broadcast %cst_13 : f32 to vector<8x128xf32>
    %31 = arith.subf %30, %29 : vector<8x128xf32>
    %cst_14 = arith.constant 7.812500e-03 : f32
    %32 = vector.broadcast %cst_14 : f32 to vector<8x128xf32>
    %33 = arith.mulf %32, %31 : vector<8x128xf32>
    %34 = arith.addf %17, %33 : vector<8x128xf32>
    %c0_15 = arith.constant 0 : index
    %c0_16 = arith.constant 0 : index
    %35 = vector.load %arg4[%c0_15, %c0_16] : memref<8x128xf32, #tpu.memory_space<vmem>>, vector<8x128xf32>
    %36 = math.log %35 : vector<8x128xf32>
    %cst_17 = arith.constant -1.000000e+02 : f32
    %37 = vector.broadcast %cst_17 : f32 to vector<8x128xf32>
    %38 = arith.maximumf %36, %37 : vector<8x128xf32>
    %cst_18 = arith.constant 1.000000e+00 : f32
    %39 = vector.broadcast %cst_18 : f32 to vector<8x128xf32>
    %40 = arith.subf %39, %35 : vector<8x128xf32>
    %41 = math.log %40 : vector<8x128xf32>
    %cst_19 = arith.constant -1.000000e+02 : f32
    %42 = vector.broadcast %cst_19 : f32 to vector<8x128xf32>
    %43 = arith.maximumf %41, %42 : vector<8x128xf32>
    %44 = arith.mulf %0, %38 : vector<8x128xf32>
    %45 = arith.mulf %2, %43 : vector<8x128xf32>
    %46 = arith.addf %44, %45 : vector<8x128xf32>
    %cst_20 = arith.constant 0.000000e+00 : f32
    %47 = vector.broadcast %cst_20 : f32 to vector<8x128xf32>
    %48 = arith.subf %47, %46 : vector<8x128xf32>
    %cst_21 = arith.constant 1.562500e-02 : f32
    %49 = vector.broadcast %cst_21 : f32 to vector<8x128xf32>
    %50 = arith.mulf %49, %48 : vector<8x128xf32>
    %51 = arith.addf %34, %50 : vector<8x128xf32>
    %c0_22 = arith.constant 0 : index
    %c0_23 = arith.constant 0 : index
    %52 = vector.load %arg5[%c0_22, %c0_23] : memref<8x128xf32, #tpu.memory_space<vmem>>, vector<8x128xf32>
    %53 = math.log %52 : vector<8x128xf32>
    %cst_24 = arith.constant -1.000000e+02 : f32
    %54 = vector.broadcast %cst_24 : f32 to vector<8x128xf32>
    %55 = arith.maximumf %53, %54 : vector<8x128xf32>
    %cst_25 = arith.constant 1.000000e+00 : f32
    %56 = vector.broadcast %cst_25 : f32 to vector<8x128xf32>
    %57 = arith.subf %56, %52 : vector<8x128xf32>
    %58 = math.log %57 : vector<8x128xf32>
    %cst_26 = arith.constant -1.000000e+02 : f32
    %59 = vector.broadcast %cst_26 : f32 to vector<8x128xf32>
    %60 = arith.maximumf %58, %59 : vector<8x128xf32>
    %61 = arith.mulf %0, %55 : vector<8x128xf32>
    %62 = arith.mulf %2, %60 : vector<8x128xf32>
    %63 = arith.addf %61, %62 : vector<8x128xf32>
    %cst_27 = arith.constant 0.000000e+00 : f32
    %64 = vector.broadcast %cst_27 : f32 to vector<8x128xf32>
    %65 = arith.subf %64, %63 : vector<8x128xf32>
    %cst_28 = arith.constant 3.125000e-02 : f32
    %66 = vector.broadcast %cst_28 : f32 to vector<8x128xf32>
    %67 = arith.mulf %66, %65 : vector<8x128xf32>
    %68 = arith.addf %51, %67 : vector<8x128xf32>
    %69 = vector.shape_cast %16 : vector<8x128xf32> to vector<1x8x128xf32>
    %cst_29 = arith.constant dense<0.000000e+00> : vector<8x128xf32>
    %70 = vector.multi_reduction <add>, %69, %cst_29 [0] : vector<1x8x128xf32> to vector<8x128xf32>
    %71 = vector.shape_cast %68 : vector<8x128xf32> to vector<1x8x128xf32>
    %cst_30 = arith.constant dense<0.000000e+00> : vector<8x128xf32>
    %72 = vector.multi_reduction <add>, %71, %cst_30 [0] : vector<1x8x128xf32> to vector<8x128xf32>
    %c0_31 = arith.constant 0 : index
    %c0_32 = arith.constant 0 : index
    %c0_33 = arith.constant 0 : index
    %c0_34 = arith.constant 0 : index
    %73 = vector.load %arg6[%c0_31, %c0_32, %c0_33, %c0_34] : memref<1x2x8x128xf32, #tpu.memory_space<vmem>>, vector<1x1x8x128xf32>
    %74 = vector.shape_cast %73 : vector<1x1x8x128xf32> to vector<8x128xf32>
    %75 = vector.shape_cast %70 : vector<8x128xf32> to vector<1x1x8x128xf32>
    tpu.vector_store %arg6[%c0_31, %c0_32, %c0_33, %c0_34], %75 {strides = array<i32>} : memref<1x2x8x128xf32, #tpu.memory_space<vmem>>, vector<1x1x8x128xf32>,
    %c0_35 = arith.constant 0 : index
    %c1 = arith.constant 1 : index
    %c0_36 = arith.constant 0 : index
    %c0_37 = arith.constant 0 : index
    %76 = vector.load %arg6[%c0_35, %c1, %c0_36, %c0_37] : memref<1x2x8x128xf32, #tpu.memory_space<vmem>>, vector<1x1x8x128xf32>
    %77 = vector.shape_cast %76 : vector<1x1x8x128xf32> to vector<8x128xf32>
    %78 = vector.shape_cast %72 : vector<8x128xf32> to vector<1x1x8x128xf32>
    tpu.vector_store %arg6[%c0_35, %c1, %c0_36, %c0_37], %78 {strides = array<i32>} : memref<1x2x8x128xf32, #tpu.memory_space<vmem>>, vector<1x1x8x128xf32>,
    return
  }
  func.func @transform_0(%arg0: i32) -> (i32, i32) {
    %c0_i32 = arith.constant 0 : i32
    %c0_i32_0 = arith.constant 0 : i32
    return %arg0, %c0_i32 : i32, i32
  }
  func.func @transform_1(%arg0: i32) -> (i32, i32) {
    %c0_i32 = arith.constant 0 : i32
    %c0_i32_0 = arith.constant 0 : i32
    return %arg0, %c0_i32 : i32, i32
  }
  func.func @transform_2(%arg0: i32) -> (i32, i32) {
    %c0_i32 = arith.constant 0 : i32
    %c0_i32_0 = arith.constant 0 : i32
    return %arg0, %c0_i32 : i32, i32
  }
  func.func @transform_3(%arg0: i32) -> (i32, i32) {
    %c0_i32 = arith.constant 0 : i32
    %c0_i32_0 = arith.constant 0 : i32
    return %arg0, %c0_i32 : i32, i32
  }
  func.func @transform_4(%arg0: i32) -> (i32, i32) {
    %c0_i32 = arith.constant 0 : i32
    %c0_i32_0 = arith.constant 0 : i32
    return %arg0, %c0_i32 : i32, i32
  }
  func.func @transform_5(%arg0: i32) -> (i32, i32, i32, i32) {
    %c0_i32 = arith.constant 0 : i32
    %c0_i32_0 = arith.constant 0 : i32
    %c0_i32_1 = arith.constant 0 : i32
    %c0_i32_2 = arith.constant 0 : i32
    return %arg0, %c0_i32, %c0_i32_0, %c0_i32_1 : i32, i32, i32, i32
  }
}

</mosaic_0001>

<llo_original>
// kernel: tpu_custom_call.1
$region0: #{tpu_custom_call.1}
  #allocation0 [shape = 'u32[]', space=smem, size = 0x4, offset = 0x4, fixed_abs, tag = 'smem constant byte address 0x4 - core index']
  #allocation1 [shape = 'u32[72,128]{1,0:T(1,128)}', space=vmem, size = 0x9000, scoped, tag = 'internal scratch']
  %s0 = inlined_call_operand.hbm [shape: f32[8,128], index: 0, kind: input, shape index: {}]
  %s1 = inlined_call_operand.hbm [shape: f32[8,128], index: 1, kind: input, shape index: {}]
  %s2 = inlined_call_operand.hbm [shape: f32[8,128], index: 2, kind: input, shape index: {}]
  %s3 = inlined_call_operand.hbm [shape: f32[8,128], index: 3, kind: input, shape index: {}]
  %s4 = inlined_call_operand.hbm [shape: f32[8,128], index: 4, kind: input, shape index: {}]
  %s5 = inlined_call_operand.hbm [shape: f32[1,2,8,128], index: 5, kind: output, shape index: {}]
  %s6 = sld [smem:[#allocation0]]
  $region50: #{tpu_custom_call.1} parent=0
    _
  %s8 = ssub.s32 1, %s6
  %s9 = scalar_select 0, %s8, %s6
  $region1: #{tpu_custom_call.1} parent=0
    #allocation2 [shape = 'u8[4096]{0}', space=vmem, size = 0x1000, scoped, tag = 'input window, operand 0, single buffered']
    #allocation3 [shape = 's32[1]{0}', space=sflag, size = 0x4, scoped, tag = 'scoped memory for tpu_custom_call.1']
    #allocation4 [shape = 's32[1]{0}', space=sflag, size = 0x4, scoped, tag = 'scoped memory for tpu_custom_call.1']
    #allocation5 [shape = 'u8[4096]{0}', space=vmem, size = 0x1000, scoped, tag = 'input window, operand 1, single buffered']
    #allocation6 [shape = 's32[1]{0}', space=sflag, size = 0x4, scoped, tag = 'scoped memory for tpu_custom_call.1']
    #allocation7 [shape = 'u8[4096]{0}', space=vmem, size = 0x1000, scoped, tag = 'input window, operand 2, single buffered']
    #allocation8 [shape = 'u8[4096]{0}', space=vmem, size = 0x1000, scoped, tag = 'input window, operand 3, single buffered']
    #allocation9 [shape = 's32[1]{0}', space=sflag, size = 0x4, scoped, tag = 'scoped memory for tpu_custom_call.1']
    #allocation10 [shape = 'u8[4096]{0}', space=vmem, size = 0x1000, scoped, tag = 'input window, operand 4, single buffered']
    #allocation11 [shape = 'u8[8192]{0}', space=vmem, size = 0x2000, scoped, tag = 'output window, operand 0, single buffered']
    %10 = vsyncpa [#allocation3], 0
    %11 = vsyncpa [#allocation6], 0
    %12 = vsyncpa [#allocation9], 0
    %13 = vsyncpa [#allocation4], 0
    // Predicated region
    $region2: #{tpu_custom_call.1} parent=1 // pred_check
      _
    $region3: #{tpu_custom_call.1} parent=1 // pred_check_branch
      %15 = sbr.rel (0) target = $region5
    $region4: #{tpu_custom_call.1} parent=1 // pred_region
      %17 = vsyncadd [#allocation3], 0
      %s19 = sshll.u32 %s0, 4
      %s20 = int_to_ptr.hbm [resolvable:$true] %s19
      %s21 = sshll.u32 [#allocation2], 4
      %s22 = int_to_ptr.vmem [resolvable:$true] %s21
      %24 = dma.hbm_to_vmem [thread:$0]  %s20, 128, %s22, [#allocation3]
    $region5: #{tpu_custom_call.1} parent=1 // pred_fallthru
      _
    // Predicated region
    $region6: #{tpu_custom_call.1} parent=1 // pred_check
      _
    $region7: #{tpu_custom_call.1} parent=1 // pred_check_branch
      %26 = sbr.rel (0) target = $region9
    $region8: #{tpu_custom_call.1} parent=1 // pred_region
      %28 = vsyncadd [#allocation6], 0
      %s30 = sshll.u32 %s1, 4
      %s31 = int_to_ptr.hbm [resolvable:$true] %s30
      %s32 = sshll.u32 [#allocation5], 4
      %s33 = int_to_ptr.vmem [resolvable:$true] %s32
      %35 = dma.hbm_to_vmem [thread:$0]  %s31, 128, %s33, [#allocation6]
    $region9: #{tpu_custom_call.1} parent=1 // pred_fallthru
      _
    // Predicated region
    $region10: #{tpu_custom_call.1} parent=1 // pred_check
      _
    $region11: #{tpu_custom_call.1} parent=1 // pred_check_branch
      %37 = sbr.rel (0) target = $region13
    $region12: #{tpu_custom_call.1} parent=1 // pred_region
      %39 = vsyncadd [#allocation6], 0
      %s41 = sshll.u32 %s2, 4
      %s42 = int_to_ptr.hbm [resolvable:$true] %s41
      %s43 = sshll.u32 [#allocation7], 4
      %s44 = int_to_ptr.vmem [resolvable:$true] %s43
      %46 = dma.hbm_to_vmem [thread:$0]  %s42, 128, %s44, [#allocation6]
    $region13: #{tpu_custom_call.1} parent=1 // pred_fallthru
      _
    // Predicated region
    $region14: #{tpu_custom_call.1} parent=1 // pred_check
      _
    $region15: #{tpu_custom_call.1} parent=1 // pred_check_branch
      %48 = sbr.rel (0) target = $region17
    $region16: #{tpu_custom_call.1} parent=1 // pred_region
      %50 = vsyncadd [#allocation9], 0
      %s52 = sshll.u32 %s3, 4
      %s53 = int_to_ptr.hbm [resolvable:$true] %s52
      %s54 = sshll.u32 [#allocation8], 4
      %s55 = int_to_ptr.vmem [resolvable:$true] %s54
      %57 = dma.hbm_to_vmem [thread:$0]  %s53, 128, %s55, [#allocation9]
    $region17: #{tpu_custom_call.1} parent=1 // pred_fallthru
      _
    // Predicated region
    $region18: #{tpu_custom_call.1} parent=1 // pred_check
      _
    $region19: #{tpu_custom_call.1} parent=1 // pred_check_branch
      %59 = sbr.rel (0) target = $region21
    $region20: #{tpu_custom_call.1} parent=1 // pred_region
      %61 = vsyncadd [#allocation9], 0
      %s63 = sshll.u32 %s4, 4
      %s64 = int_to_ptr.hbm [resolvable:$true] %s63
      %s65 = sshll.u32 [#allocation10], 4
      %s66 = int_to_ptr.vmem [resolvable:$true] %s65
      %68 = dma.hbm_to_vmem [thread:$0]  %s64, 128, %s66, [#allocation9]
    $region21: #{tpu_custom_call.1} parent=1 // pred_fallthru
      _
    // Predicated region
    $region22: #{tpu_custom_call.1} parent=1 // pred_check
      _
    $region23: #{tpu_custom_call.1} parent=1 // pred_check_branch
      %70 = sbr.rel (0) target = $region25
    $region24: #{tpu_custom_call.1} parent=1 // pred_region
      %72 = dma.done [#allocation3], 128
    $region25: #{tpu_custom_call.1} parent=1 // pred_fallthru
      _
    // Predicated region
    $region26: #{tpu_custom_call.1} parent=1 // pred_check
      _
    $region27: #{tpu_custom_call.1} parent=1 // pred_check_branch
      %74 = sbr.rel (0) target = $region29
    $region28: #{tpu_custom_call.1} parent=1 // pred_region
      %76 = dma.done [#allocation6], 128
    $region29: #{tpu_custom_call.1} parent=1 // pred_fallthru
      _
    // Predicated region
    $region30: #{tpu_custom_call.1} parent=1 // pred_check
      _
    $region31: #{tpu_custom_call.1} parent=1 // pred_check_branch
      %78 = sbr.rel (0) target = $region33
    $region32: #{tpu_custom_call.1} parent=1 // pred_region
      %80 = dma.done [#allocation6], 128
    $region33: #{tpu_custom_call.1} parent=1 // pred_fallthru
      _
    // Predicated region
    $region34: #{tpu_custom_call.1} parent=1 // pred_check
      _
    $region35: #{tpu_custom_call.1} parent=1 // pred_check_branch
      %82 = sbr.rel (0) target = $region37
    $region36: #{tpu_custom_call.1} parent=1 // pred_region
      %84 = dma.done [#allocation9], 128
    $region37: #{tpu_custom_call.1} parent=1 // pred_fallthru
      _
    // Predicated region
    $region38: #{tpu_custom_call.1} parent=1 // pred_check
      _
    $region39: #{tpu_custom_call.1} parent=1 // pred_check_branch
      %86 = sbr.rel (0) target = $region41
    $region40: #{tpu_custom_call.1} parent=1 // pred_region
      %88 = dma.done [#allocation9], 128
    $region41: #{tpu_custom_call.1} parent=1 // pred_fallthru
      _
    %v89 = vld [vmem:[#allocation2] sm:$0xff]
    %v90 = vsub.f32 1.0, %v89
    %v91 = vld [vmem:[#allocation5] sm:$0xff]
    %v92 = vlog2.pop %v91
    %v93 = vmul.f32 %v92, 0.6931472
    %v94 = vmax.f32 %v93, -100.0
    %v95 = vsub.f32 1.0, %v91
    %v96 = vlog2.pop %v95
    %v97 = vmul.f32 %v96, 0.6931472
    %v98 = vmax.f32 %v97, -100.0
    %v99 = vmul.f32 %v89, %v94
    %v100 = vmul.f32 %v90, %v98
    %v101 = vadd.f32 %v99, %v100
    %v102 = vsub.f32 0.0, %v101
    %v103 = vld [vmem:[#allocation7] sm:$0xff]
    %v104 = vlog2.pop %v103
    %v105 = vmul.f32 %v104, 0.6931472
    %v106 = vmax.f32 %v105, -100.0
    %v107 = vsub.f32 1.0, %v103
    %v108 = vlog2.pop %v107
    %v109 = vmul.f32 %v108, 0.6931472
    %v110 = vmax.f32 %v109, -100.0
    %v111 = vmul.f32 %v89, %v106
    %v112 = vmul.f32 %v90, %v110
    %v113 = vadd.f32 %v111, %v112
    %v114 = vsub.f32 0.0, %v113
    %v115 = vmul.f32 %v114, 0.0078125
    %v116 = vadd.f32 %v115, 0.0
    %v117 = vld [vmem:[#allocation8] sm:$0xff]
    %v118 = vlog2.pop %v117
    %v119 = vmul.f32 %v118, 0.6931472
    %v120 = vmax.f32 %v119, -100.0
    %v121 = vsub.f32 1.0, %v117
    %v122 = vlog2.pop %v121
    %v123 = vmul.f32 %v122, 0.6931472
    %v124 = vmax.f32 %v123, -100.0
    %v125 = vmul.f32 %v89, %v120
    %v126 = vmul.f32 %v90, %v124
    %v127 = vadd.f32 %v125, %v126
    %v128 = vsub.f32 0.0, %v127
    %v129 = vmul.f32 %v128, 0.015625
    %v130 = vadd.f32 %v116, %v129
    %v131 = vld [vmem:[#allocation10] sm:$0xff]
    %v132 = vlog2.pop %v131
    %v133 = vmul.f32 %v132, 0.6931472
    %v134 = vmax.f32 %v133, -100.0
    %v135 = vsub.f32 1.0, %v131
    %v136 = vlog2.pop %v135
    %v137 = vmul.f32 %v136, 0.6931472
    %v138 = vmax.f32 %v137, -100.0
    %v139 = vmul.f32 %v89, %v134
    %v140 = vmul.f32 %v90, %v138
    %v141 = vadd.f32 %v139, %v140
    %v142 = vsub.f32 0.0, %v141
    %v143 = vmul.f32 %v142, 0.03125
    %v144 = vadd.f32 %v130, %v143
    %v145 = vadd.f32 %v102, 0.0
    %v146 = vadd.f32 %v144, 0.0
    %147 = vst [vmem:[#allocation11] sm:$0xff] %v145
    %s148 = scalar_lea.vmem [#allocation11], 8
    %149 = vst [vmem:[%s148] sm:$0xff] %v146
    // Predicated region
    $region42: #{tpu_custom_call.1} parent=1 // pred_check
      _
    $region43: #{tpu_custom_call.1} parent=1 // pred_check_branch
      %151 = sbr.rel (0) target = $region45
    $region44: #{tpu_custom_call.1} parent=1 // pred_region
      %153 = vsyncadd [#allocation4], 0
      %s154 = sshll.u32 [#allocation11], 4
      %s155 = int_to_ptr.vmem [resolvable:$true] %s154
      %s156 = sshll.u32 %s5, 4
      %s157 = int_to_ptr.hbm [resolvable:$true] %s156
      %162 = dma.vmem_to_hbm [thread:$0]  %s155, 256, %s157, [#allocation4], 128, 128, 8
    $region45: #{tpu_custom_call.1} parent=1 // pred_fallthru
      _
    // Predicated region
    $region46: #{tpu_custom_call.1} parent=1 // pred_check
      _
    $region47: #{tpu_custom_call.1} parent=1 // pred_check_branch
      %164 = sbr.rel (0) target = $region49
    $region48: #{tpu_custom_call.1} parent=1 // pred_region
      %166 = dma.done [#allocation4], 256
    $region49: #{tpu_custom_call.1} parent=1 // pred_fallthru
      _
    %167 = vsyncpa [#allocation3], 1
    %168 = vsyncpa [#allocation6], 1
    %169 = vsyncpa [#allocation9], 1
    %170 = vsyncpa [#allocation4], 1

</llo_original>
